<compile_context>
chip_gen: v6e
topology: v6e:2x2x1
jax: 0.10.0
libtpu: 0.0.40
codegen_flags: <defaults>
</compile_context>

<pallas_src>
import math
import functools

import jax
import jax.numpy as jnp
from jax.experimental import pallas as pl
from jax.experimental.pallas import tpu as pltpu


def _round_up(a, b):
    return (a + b - 1) // b * b


def _self_attention_kernel(dropout_rate, kv_block, matmul_dtype,
                           use_approx_recip, use_hw_prng,
                           seed_ref, x_ref, wqkv_ref, o_ref):
    gb = pl.program_id(0)                      # batch-group index

    x = x_ref[...]                             # (Bb, T, C)  float32
    wqkv = wqkv_ref[...]                       # (C, 3*d_k_pad) matmul_dtype (Wq pre-scaled)
    Bb, T, C = x.shape
    d_k_pad = wqkv.shape[1] // 3
    num_kv = T // kv_block

    # ---- fused QKV projection: one MXU matmul (Bb*T, C) @ (C, 3*d_k_pad) -----
    x2 = x.reshape(Bb * T, C).astype(matmul_dtype)
    qkv = jnp.dot(x2, wqkv, preferred_element_type=jnp.float32)   # (Bb*T, 3*d_k_pad) f32
    # 128-aligned lane slices (d_k_pad is a multiple of 128) -> no relayout.
    q = qkv[:, 0 * d_k_pad:1 * d_k_pad].reshape(Bb, T, d_k_pad).astype(matmul_dtype)
    k = qkv[:, 1 * d_k_pad:2 * d_k_pad].reshape(Bb, T, d_k_pad).astype(matmul_dtype)
    v = qkv[:, 2 * d_k_pad:3 * d_k_pad].reshape(Bb, T, d_k_pad).astype(matmul_dtype)

    # ---- dropout setup --------------------------------------------------------
    if dropout_rate > 0.0:
        keep_thresh24 = jnp.int32(int((1.0 - dropout_rate) * (1 << 24)))
        inv_keep = jnp.float32(1.0 / (1.0 - dropout_rate))
        if use_hw_prng:
            # Independent stream per batch group (grid steps may run on different TCs).
            pltpu.prng_seed(seed_ref[0], gb)
        else:
            seed_u = seed_ref[0].astype(jnp.uint32)

    # ---- causal-mask indices, hoisted out of the KV loop ----------------------
    row_ids = jax.lax.broadcasted_iota(jnp.int32, (1, T, kv_block), 1)   # query index
    col_base = jax.lax.broadcasted_iota(jnp.int32, (1, T, kv_block), 2)  # local key index
    # Large finite negative: exp underflows to 0.  Safe for causal masking since every
    # query row keeps at least one entry (would NOT be safe for padding masks).
    neg_big = jnp.float32(-1e30)

    # ---- online-softmax (flash) recurrence over KV blocks ---------------------
    m_i = jnp.full((Bb, T, 1), -1e30, jnp.float32)
    l_i = jnp.zeros((Bb, T, 1), jnp.float32)
    acc = jnp.zeros((Bb, T, d_k_pad), jnp.float32)

    for j in range(num_kv):
        kv0 = j * kv_block
        k_blk = k[:, kv0:kv0 + kv_block, :]                  # (Bb, kvb, d_k_pad)
        v_blk = v[:, kv0:kv0 + kv_block, :]

        # scores = Q @ K_blk^T (batched, contraction on last axes; no XLU transpose)
        s = jax.lax.dot_general(
            q, k_blk, dimension_numbers=(((2,), (2,)), ((0,), (0,))),
            preferred_element_type=jnp.float32)              # (Bb, T, kvb) f32
        s = jnp.where(col_base + kv0 <= row_ids, s, neg_big)

        m_new = jnp.maximum(m_i, jnp.max(s, axis=-1, keepdims=True))
        alpha = jnp.exp(m_i - m_new)
        p = jnp.exp(s - m_new)                               # (Bb, T, kvb) f32
        l_i = alpha * l_i + jnp.sum(p, axis=-1, keepdims=True)

        if dropout_rate > 0.0:
            if use_hw_prng:
                bits = pltpu.prng_random_bits((Bb * T, kv_block)).reshape(Bb, T, kv_block)
                if bits.dtype != jnp.dtype(jnp.uint32):
                    bits = pltpu.bitcast(bits, jnp.uint32)
            else:
                # Portable counter-based lowbias32 hash (interpret / CPU fallback only).
                b_off = gb * Bb + jax.lax.broadcasted_iota(jnp.int32, (Bb, 1, 1), 0)
                ctr = (b_off * (T * T) + row_ids * T + (col_base + kv0)).astype(jnp.uint32)
                u = ctr ^ ((seed_u + jnp.uint32(1)) * jnp.uint32(0x9E3779B9))
                u = (u ^ (u >> 16)) * jnp.uint32(0x7FEB352D)
                u = (u ^ (u >> 15)) * jnp.uint32(0x846CA68B)
                bits = u ^ (u >> 16)
            # Pure-integer keep test on the top 24 random bits (no float convert).
            keep = (bits >> 8).astype(jnp.int32) < keep_thresh24
            p = jnp.where(keep, p * inv_keep, jnp.float32(0.0))

        acc = alpha * acc + jax.lax.dot_general(
            p.astype(matmul_dtype), v_blk,
            dimension_numbers=(((2,), (1,)), ((0,), (0,))),
            preferred_element_type=jnp.float32)              # (Bb, T, d_k_pad)
        m_i = m_new

    if use_approx_recip:
        inv_l = pl.reciprocal(l_i, approx=True)              # EUP slot (bf16 path only)
    else:
        inv_l = 1.0 / l_i                                    # exact (f32 reference path)
    # Lane-dense (d_k_pad = multiple of 128) store -> unmasked vst.
    o_ref[...] = (acc * inv_l).astype(o_ref.dtype)


def self_attention(x, wk_t, wq_t, wv_t, *, dropout_rate=0.2, seed=0,
                   matmul_dtype=jnp.bfloat16, batch_block=None, kv_block=None):
    """x: (B, T, C) float32; w*_t: (C, d_k) float32 (already transposed)."""
    B, T, C = x.shape
    d_k = wk_t.shape[1]
    d_k_pad = _round_up(d_k, 128)

    # Fold 1/sqrt(C) into Wq (free), zero-pad each projection to 128 lanes, fuse,
    # and cast to the MXU dtype on the host (halves weight DMA, no per-step cast).
    scale = jnp.float32(1.0 / math.sqrt(C))

    def pad_cols(w):
        return jnp.pad(w, ((0, 0), (0, d_k_pad - d_k)))

    wqkv = jnp.concatenate(
        [pad_cols(wq_t * scale), pad_cols(wk_t), pad_cols(wv_t)],
        axis=1).astype(matmul_dtype)                         # (C, 3*d_k_pad)

    # Batch group size: target ~256 MXU rows per step, keep >= 2 grid steps when
    # possible (v7x: 2 TensorCores), and require Bb | B (no padded garbage rows).
    if batch_block is None:
        target = max(1, min(B, pl.cdiv(256, T)))
        if B > 1:
            target = min(target, pl.cdiv(B, 2))
        batch_block = max(d for d in range(1, target + 1) if B % d == 0)
    Bb = int(batch_block)
    if B % Bb != 0:
        raise ValueError(f"batch_block={Bb} must divide B={B}")
    grid = (B // Bb,)

    if kv_block is None:
        kv_block = min(T, 512)
    kv_block = int(kv_block)
    if T % kv_block != 0 or not (kv_block % 8 == 0 or kv_block == T):
        raise ValueError(f"kv_block={kv_block} must divide T={T} (and be a multiple of 8)")

    on_tpu = jax.default_backend() == "tpu"
    use_hw_prng = on_tpu
    # Exact reciprocal on the f32 reference path; approx EUP reciprocal otherwise.
    use_approx_recip = on_tpu and jnp.dtype(matmul_dtype) != jnp.dtype(jnp.float32)

    seed_arr = jnp.array([seed], dtype=jnp.int32)

    kernel = functools.partial(_self_attention_kernel, float(dropout_rate),
                               kv_block, matmul_dtype, use_approx_recip, use_hw_prng)

    # Rough per-step VMEM budget (double-buffered blocks + weights + temporaries),
    # clamped to [16 MiB, 64 MiB] so it is valid on v5e/v6e/v7x.
    mm_bytes = jnp.dtype(matmul_dtype).itemsize
    vmem_est = (
        2 * Bb * T * C * 4                          # double-buffered x blocks (f32)
        + 2 * Bb * T * d_k_pad * 4                  # double-buffered out blocks (f32)
        + 2 * C * 3 * d_k_pad * mm_bytes            # fused weight
        + Bb * T * 3 * d_k_pad * (4 + mm_bytes)     # qkv f32 + q/k/v casts
        + 6 * Bb * T * kv_block * 4                 # scores / p / mask / rng temporaries
        + 2 * Bb * T * d_k_pad * 4                  # accumulator (+ slack)
        + (4 << 20)                                 # compiler scratch headroom
    )
    vmem_limit = int(min(max(vmem_est, 16 << 20), 64 << 20))

    out = pl.pallas_call(
        kernel,
        out_shape=jax.ShapeDtypeStruct((B, T, d_k_pad), jnp.float32),
        grid_spec=pltpu.PrefetchScalarGridSpec(
            num_scalar_prefetch=1,
            grid=grid,
            in_specs=[
                pl.BlockSpec((Bb, T, C), lambda g, seed: (g, 0, 0)),
                pl.BlockSpec((C, 3 * d_k_pad), lambda g, seed: (0, 0)),
            ],
            out_specs=pl.BlockSpec((Bb, T, d_k_pad), lambda g, seed: (g, 0, 0)),
        ),
        compiler_params=pltpu.CompilerParams(
            dimension_semantics=("parallel",),       # independent batch groups (v7x 2 TCs)
            vmem_limit_bytes=vmem_limit,
        ),
    )(seed_arr, x, wqkv)

    # Slice off the lane padding outside the kernel (layout plumbing only).
    return out[:, :, :d_k]


def _reference_no_dropout(x, wk_t, wq_t, wv_t):
    B, T, C = x.shape
    k = x @ wk_t
    q = x @ wq_t
    v = x @ wv_t
    scores = (q @ jnp.swapaxes(k, -2, -1)) * (1.0 / math.sqrt(C))
    mask = jnp.tril(jnp.ones((T, T), dtype=bool))
    scores = jnp.where(mask, scores, -jnp.inf)
    attn = jax.nn.softmax(scores, axis=-1)
    return attn @ v


if __name__ == "__main__":
    # Small shapes consistent with the module's forward: X is (B, T, d_model),
    # one head projects d_model -> d_k = d_model // h.
    B, T = 4, 16
    d_model = 64
    n_heads = 4
    d_k = d_model // n_heads          # 16
    dropout_rate = 0.2

    key = jax.random.PRNGKey(0)
    kx, kk, kq, kv = jax.random.split(key, 4)

    x = jax.random.normal(kx, (B, T, d_model), dtype=jnp.float32)

    # nn.Linear(d_model, d_k, bias=False) weight is (d_k, d_model); init like PyTorch
    # (uniform in [-1/sqrt(in), 1/sqrt(in)]) and pass transposed (d_model, d_k).
    bound = 1.0 / math.sqrt(d_model)
    wk = jax.random.uniform(kk, (d_k, d_model), jnp.float32, -bound, bound)
    wq = jax.random.uniform(kq, (d_k, d_model), jnp.float32, -bound, bound)
    wv = jax.random.uniform(kv, (d_k, d_model), jnp.float32, -bound, bound)
    wk_t, wq_t, wv_t = wk.T, wq.T, wv.T

    ref = _reference_no_dropout(x, wk_t, wq_t, wv_t)

    # 1) f32 MXU path, dropout off, single KV block: tight correctness check.
    out_f32 = jax.block_until_ready(
        self_attention(x, wk_t, wq_t, wv_t, dropout_rate=0.0,
                       matmul_dtype=jnp.float32))
    assert out_f32.shape == (B, T, d_k)
    assert jnp.allclose(out_f32, ref, atol=1e-4, rtol=1e-4)

    # 2) Same, with 2 KV blocks to exercise the online-softmax recurrence.
    out_kv = jax.block_until_ready(
        self_attention(x, wk_t, wq_t, wv_t, dropout_rate=0.0,
                       matmul_dtype=jnp.float32, kv_block=8))
    assert jnp.allclose(out_kv, ref, atol=1e-4, rtol=1e-4)

    # 3) bf16-MXU / f32-accumulate fast path, dropout disabled (loose tolerance).
    out_bf16 = jax.block_until_ready(
        self_attention(x, wk_t, wq_t, wv_t, dropout_rate=0.0,
                       matmul_dtype=jnp.bfloat16))
    assert jnp.allclose(out_bf16, ref, atol=5e-2, rtol=5e-2)

    # 4) Full forward as in the module (dropout active, deterministic seed).
    out = jax.block_until_ready(
        self_attention(x, wk_t, wq_t, wv_t, dropout_rate=dropout_rate, seed=0))
    assert out.shape == (B, T, d_k)
    assert jnp.all(jnp.isfinite(out))

    print("KERNEL_OK")
</pallas_src>

<mosaic_0001>
module attributes {stable_mosaic.version = 11 : i64} {
  func.func @_self_attention_kernel(%arg0: i32, %arg1: memref<1xi32, #tpu.memory_space<smem>>, %arg2: memref<2x16x64xf32, #tpu.memory_space<vmem>>, %arg3: memref<64x384xf32, #tpu.memory_space<vmem>>, %arg4: memref<2x16x128xf32, #tpu.memory_space<vmem>>) attributes {dimension_semantics = [#tpu.dimension_semantics<parallel>], iteration_bounds = array<i64: 2>, scalar_prefetch = 1 : i64, scratch_operands = 0 : i64, tpu.core_type = #tpu.core_type<tc>, window_params = [{transform_indices = @transform_0, window_bounds = array<i64: 2, 16, 64>}, {pipeline_mode = #tpu.pipeline_mode<synchronous>, transform_indices = @transform_1, window_bounds = array<i64: 64, 384>}, {transform_indices = @transform_2, window_bounds = array<i64: 2, 16, 128>}]} {
    %c0 = arith.constant 0 : index
    %c0_0 = arith.constant 0 : index
    %c0_1 = arith.constant 0 : index
    %0 = vector.load %arg2[%c0, %c0_0, %c0_1] : memref<2x16x64xf32, #tpu.memory_space<vmem>>, vector<2x16x64xf32>
    %c0_2 = arith.constant 0 : index
    %c0_3 = arith.constant 0 : index
    %1 = vector.load %arg3[%c0_2, %c0_3] : memref<64x384xf32, #tpu.memory_space<vmem>>, vector<64x384xf32>
    %2 = vector.shape_cast %0 : vector<2x16x64xf32> to vector<32x64xf32>
    %cst = arith.constant dense<0.000000e+00> : vector<32x384xf32>
    %3 = tpu.matmul %2, %1, %cst {dimension_numbers = #tpu.dot_dimension_numbers<[1], [0], [0], [1], [0, 0, 1, 1], [], []>} : vector<32x64xf32>, vector<64x384xf32>, vector<32x384xf32> -> vector<32x384xf32>
    %4 = vector.extract_strided_slice %3 {offsets = [0, 0], sizes = [32, 128], strides = [1, 1]} : vector<32x384xf32> to vector<32x128xf32>
    %5 = vector.shape_cast %4 : vector<32x128xf32> to vector<2x16x128xf32>
    %6 = vector.extract_strided_slice %3 {offsets = [0, 128], sizes = [32, 128], strides = [1, 1]} : vector<32x384xf32> to vector<32x128xf32>
    %7 = vector.shape_cast %6 : vector<32x128xf32> to vector<2x16x128xf32>
    %8 = vector.extract_strided_slice %3 {offsets = [0, 256], sizes = [32, 128], strides = [1, 1]} : vector<32x384xf32> to vector<32x128xf32>
    %9 = vector.shape_cast %8 : vector<32x128xf32> to vector<2x16x128xf32>
    %10 = tpu.iota {dimensions = array<i32: 1>} : vector<1x16x16xi32>
    %11 = tpu.iota {dimensions = array<i32: 2>} : vector<1x16x16xi32>
    %cst_4 = arith.constant -1.000000e+30 : f32
    %12 = vector.broadcast %cst_4 : f32 to vector<2x16x1xf32>
    %cst_5 = arith.constant 0.000000e+00 : f32
    %13 = vector.broadcast %cst_5 : f32 to vector<2x16x1xf32>
    %cst_6 = arith.constant 0.000000e+00 : f32
    %14 = vector.broadcast %cst_6 : f32 to vector<2x16x128xf32>
    %cst_7 = arith.constant dense<0.000000e+00> : vector<2x16x16xf32>
    %15 = tpu.matmul %5, %7, %cst_7 {dimension_numbers = #tpu.dot_dimension_numbers<[2], [2], [1], [1], [0, 0, 0, 1, 1, 1], [0], [0]>} : vector<2x16x128xf32>, vector<2x16x128xf32>, vector<2x16x16xf32> -> vector<2x16x16xf32>
    %c0_i32 = arith.constant 0 : i32
    %16 = vector.broadcast %c0_i32 : i32 to vector<1x16x16xi32>
    %17 = arith.addi %11, %16 : vector<1x16x16xi32>
    %18 = arith.cmpi sle, %17, %10 : vector<1x16x16xi32>
    %cst_8 = arith.constant -1.000000e+30 : f32
    %19 = vector.shape_cast %18 : vector<1x16x16xi1> to vector<1x16x16xi1>
    %20 = vector.broadcast %19 : vector<1x16x16xi1> to vector<2x16x16xi1>
    %21 = vector.broadcast %cst_8 : f32 to vector<2x16x16xf32>
    %22 = arith.select %20, %15, %21 : vector<2x16x16xi1>, vector<2x16x16xf32>
    %cst_9 = arith.constant dense<0xFF800000> : vector<2x16xf32>
    %23 = vector.multi_reduction <maximumf>, %22, %cst_9 [2] : vector<2x16x16xf32> to vector<2x16xf32>
    %24 = vector.shape_cast %23 : vector<2x16xf32> to vector<2x16x1xf32>
    %25 = arith.maximumf %12, %24 : vector<2x16x1xf32>
    %26 = arith.subf %12, %25 : vector<2x16x1xf32>
    %27 = math.exp %26 : vector<2x16x1xf32>
    %28 = vector.broadcast %25 : vector<2x16x1xf32> to vector<2x16x16xf32>
    %29 = arith.subf %22, %28 : vector<2x16x16xf32>
    %30 = math.exp %29 : vector<2x16x16xf32>
    %31 = arith.mulf %27, %13 : vector<2x16x1xf32>
    %cst_10 = arith.constant dense<0.000000e+00> : vector<2x16xf32>
    %32 = vector.multi_reduction <add>, %30, %cst_10 [2] : vector<2x16x16xf32> to vector<2x16xf32>
    %33 = vector.shape_cast %32 : vector<2x16xf32> to vector<2x16x1xf32>
    %34 = arith.addf %31, %33 : vector<2x16x1xf32>
    %35 = vector.broadcast %27 : vector<2x16x1xf32> to vector<2x16x128xf32>
    %36 = arith.mulf %35, %14 : vector<2x16x128xf32>
    %cst_11 = arith.constant dense<0.000000e+00> : vector<2x16x128xf32>
    %37 = tpu.matmul %30, %9, %cst_11 {dimension_numbers = #tpu.dot_dimension_numbers<[2], [1], [1], [2], [0, 0, 0, 1, 1, 2], [0], [0]>} : vector<2x16x16xf32>, vector<2x16x128xf32>, vector<2x16x128xf32> -> vector<2x16x128xf32>
    %38 = arith.addf %36, %37 : vector<2x16x128xf32>
    %cst_12 = arith.constant 1.000000e+00 : f32
    %39 = vector.broadcast %cst_12 : f32 to vector<2x16x1xf32>
    %40 = arith.divf %39, %34 : vector<2x16x1xf32>
    %41 = vector.broadcast %40 : vector<2x16x1xf32> to vector<2x16x128xf32>
    %42 = arith.mulf %38, %41 : vector<2x16x128xf32>
    %c0_13 = arith.constant 0 : index
    %c0_14 = arith.constant 0 : index
    %c0_15 = arith.constant 0 : index
    %43 = vector.load %arg4[%c0_13, %c0_14, %c0_15] : memref<2x16x128xf32, #tpu.memory_space<vmem>>, vector<2x16x128xf32>
    tpu.vector_store %arg4[%c0_13, %c0_14, %c0_15], %42 {strides = array<i32>} : memref<2x16x128xf32, #tpu.memory_space<vmem>>, vector<2x16x128xf32>,
    return
  }
  func.func @transform_0(%arg0: i32, %arg1: memref<1xi32, #tpu.memory_space<smem>>) -> (i32, i32, i32) {
    %c0_i32 = arith.constant 0 : i32
    %c0_i32_0 = arith.constant 0 : i32
    %c0_i32_1 = arith.constant 0 : i32
    return %arg0, %c0_i32, %c0_i32_0 : i32, i32, i32
  }
  func.func @transform_1(%arg0: i32, %arg1: memref<1xi32, #tpu.memory_space<smem>>) -> (i32, i32) {
    %c0_i32 = arith.constant 0 : i32
    %c0_i32_0 = arith.constant 0 : i32
    %c0_i32_1 = arith.constant 0 : i32
    return %c0_i32, %c0_i32_0 : i32, i32
  }
  func.func @transform_2(%arg0: i32, %arg1: memref<1xi32, #tpu.memory_space<smem>>) -> (i32, i32, i32) {
    %c0_i32 = arith.constant 0 : i32
    %c0_i32_0 = arith.constant 0 : i32
    %c0_i32_1 = arith.constant 0 : i32
    return %arg0, %c0_i32, %c0_i32_0 : i32, i32, i32
  }
}

</mosaic_0001>

<llo_original>
// kernel: tpu_custom_call.1
$region0: #{tpu_custom_call.1}
  #allocation0 [shape = 'u32[]', space=smem, size = 0x4, offset = 0x4, fixed_abs, tag = 'smem constant byte address 0x4 - core index']
  #allocation1 [shape = 'u32[144,128]{1,0:T(1,128)}', space=vmem, size = 0x12000, scoped, tag = 'internal scratch']
  #allocation2 [shape = 's32[1]{0}', space=sflag, size = 0x4, scoped, tag = 'scoped memory for tpu_custom_call.1']
  #allocation3 [shape = 's32[1]{0:T(128)S(6)}', space=smem, size = 0x200, scoped, tag = 'prefetched SMEM operand 0']
  %s0 = inlined_call_operand.<no memory space> [shape: s32[1], index: 0, kind: input, shape index: {}]
  %s1 = inlined_call_operand.hbm [shape: f32[4,16,64], index: 1, kind: input, shape index: {}]
  %s2 = inlined_call_operand.hbm [shape: f32[64,384], index: 2, kind: input, shape index: {}]
  %s3 = inlined_call_operand.hbm [shape: f32[4,16,128], index: 3, kind: output, shape index: {}]
  %s4 = sld [smem:[#allocation0]]
  $region49: #{tpu_custom_call.1} parent=0
    _
  %s6 = ssub.s32 1, %s4
  %s7 = scalar_select 0, %s6, %s4
  %8 = sst [smem:[#allocation3]] %s0
  $region1: #{tpu_custom_call.1} parent=0
    #allocation4 [shape = 'u8[32768]{0}', space=vmem, size = 0x8000, scoped, tag = 'input window, operand 1']
    #allocation5 [shape = 's32[2]{0}', space=sflag, size = 0x8, scoped, tag = 'scoped memory for tpu_custom_call.1']
    #allocation6 [shape = 's32[2]{0}', space=sflag, size = 0x8, scoped, tag = 'scoped memory for tpu_custom_call.1']
    #allocation7 [shape = 'u8[98304]{0}', space=vmem, size = 0x18000, scoped, tag = 'input window, operand 2, single buffered']
    #allocation8 [shape = 's32[1]{0}', space=sflag, size = 0x4, scoped, tag = 'scoped memory for tpu_custom_call.1']
    #allocation9 [shape = 'u8[32768]{0}', space=vmem, size = 0x8000, scoped, tag = 'output window, operand 0']
    %9 = vsyncpa [#allocation5], 0
    %s10 = scalar_lea.sflag [#allocation5], 1
    %11 = vsyncpa %s10, 0
    %12 = vsyncpa [#allocation8], 0
    %13 = vsyncpa [#allocation6], 0
    %s14 = scalar_lea.sflag [#allocation6], 1
    %15 = vsyncpa %s14, 0
    loop: start=0, step=1, limit=4
    $region2: #{tpu_custom_call.1} parent=1 // loop_pre_header
      _
    $region3: #{tpu_custom_call.1} parent=1 // loop_header
      %s17 = sphi 0, %s21
      %p18 = scmp.ge.s32.totalorder %s17, 4
      %s27 = sphi 0, %s29
      %s30 = sphi 0, %s27
      %s31 = sphi 0, %s30
      %s47 = sphi 0, %s31
      %s51 = sphi 0, %s51
      %s53 = sphi 0, %s51
      %s54 = sphi 0, %s53
      %s68 = sphi 0, %s54
      %s74 = sphi 0, %s76
      %s77 = sphi 0, %s74
      %s78 = sphi 0, %s77
      %s94 = sphi 0, %s78
    $region4: #{tpu_custom_call.1} parent=1 // loop_header_branch
      %20 = sbr.rel (%p18) target = $region8
    $region5: #{tpu_custom_call.1} parent=1 // loop_body
      %s22 = ssub.s32 %s17, 1
      %s23 = ssub.s32 %s17, 2
      %s24 = sadd.s32 %s17, 1
      %s25 = ssub.s32 %s17, %s24
      %p26 = scmp.eq.s32.totalorder %s25, 0
      %s28 = sadd.s32 %s27, 1
      %s29 = scalar_select %p26, %s27, %s28
      %p32 = pneg %p26
      %p33 = scmp.eq.s32.totalorder %s17, 1
      %p34 = por %p32, %p33
      %p35 = scmp.ne.s32.totalorder %s27, %s30
      %p36 = scmp.eq.s32.totalorder %s17, 0
      %p37 = por %p35, %p36
      %p38 = scmp.ne.s32.totalorder %s27, %s30
      %p39 = scmp.eq.s32.totalorder %s22, 1
      %p40 = por %p38, %p39
      %p41 = scmp.ne.s32.totalorder %s30, %s31
      %p42 = scmp.eq.s32.totalorder %s22, 0
      %p43 = por %p41, %p42
      %p44 = scmp.ne.s32.totalorder %s30, %s31
      %p45 = scmp.eq.s32.totalorder %s23, 1
      %p46 = por %p44, %p45
      %p48 = scmp.ne.s32.totalorder %s31, %s47
      %p49 = scmp.eq.s32.totalorder %s23, 0
      %p50 = por %p48, %p49
      %s52 = sadd.s32 %s51, 1
      %p55 = scmp.eq.s32.totalorder %s17, 1
      %p56 = scmp.ne.s32.totalorder %s51, %s53
      %p57 = scmp.eq.s32.totalorder %s17, 0
      %p58 = por %p56, %p57
      %p59 = scmp.ne.s32.totalorder %s51, %s53
      %p60 = scmp.eq.s32.totalorder %s22, 1
      %p61 = por %p59, %p60
      %p62 = scmp.ne.s32.totalorder %s53, %s54
      %p63 = scmp.eq.s32.totalorder %s22, 0
      %p64 = por %p62, %p63
      %p65 = scmp.ne.s32.totalorder %s53, %s54
      %p66 = scmp.eq.s32.totalorder %s23, 1
      %p67 = por %p65, %p66
      %p69 = scmp.ne.s32.totalorder %s54, %s68
      %p70 = scmp.eq.s32.totalorder %s23, 0
      %p71 = por %p69, %p70
      %s72 = ssub.s32 %s17, %s24
      %p73 = scmp.eq.s32.totalorder %s72, 0
      %s75 = sadd.s32 %s74, 1
      %s76 = scalar_select %p73, %s74, %s75
      %p79 = pneg %p73
      %p80 = scmp.eq.s32.totalorder %s17, 1
      %p81 = por %p79, %p80
      %p82 = scmp.ne.s32.totalorder %s74, %s77
      %p83 = scmp.eq.s32.totalorder %s17, 0
      %p84 = por %p82, %p83
      %p85 = scmp.ne.s32.totalorder %s74, %s77
      %p86 = scmp.eq.s32.totalorder %s22, 1
      %p87 = por %p85, %p86
      %p88 = scmp.ne.s32.totalorder %s77, %s78
      %p89 = scmp.eq.s32.totalorder %s22, 0
      %p90 = por %p88, %p89
      %p91 = scmp.ne.s32.totalorder %s77, %s78
      %p92 = scmp.eq.s32.totalorder %s23, 1
      %p93 = por %p91, %p92
      %p95 = scmp.ne.s32.totalorder %s78, %s94
      %p96 = scmp.eq.s32.totalorder %s23, 0
      %p97 = por %p95, %p96
      %p98 = scmp.le.s32.totalorder 1, %s17
      %p99 = scmp.lt.s32.totalorder %s17, 3
      %p100 = pnand %p98, %p99
      %p101 = pneg %p100
      // Predicated region
      $region9: #{tpu_custom_call.1} parent=5 // pred_check
        _
      $region10: #{tpu_custom_call.1} parent=5 // pred_check_branch
        %103 = sbr.rel (%p100) target = $region12
      $region11: #{tpu_custom_call.1} parent=5 // pred_region
        %s104 = ssub.s32 %s17, 1
        // Predicated region
        $region13: #{tpu_custom_call.1} parent=11 // pred_check
          %p105 = pneg %p64
        $region14: #{tpu_custom_call.1} parent=11 // pred_check_branch
          %107 = sbr.rel (%p105) target = $region16
        $region15: #{tpu_custom_call.1} parent=11 // pred_region
          %s109 = ssub.s32 3072, 3072
          %110 = vsyncadd [#allocation8], %s109
          %s111 = sshll.u32 [#allocation7], 4
          %s112 = int_to_ptr.vmem [resolvable:$true] %s111
          %117 = dma.hbm_to_vmem [thread:$0]  %s2, 3072, %s112, [#allocation8], 384, 384, 24
        $region16: #{tpu_custom_call.1} parent=11 // pred_fallthru
          _
      $region12: #{tpu_custom_call.1} parent=5 // pred_fallthru
        _
      %p118 = scmp.lt.s32.totalorder %s17, 2
      // Predicated region
      $region17: #{tpu_custom_call.1} parent=5 // pred_check
        %p119 = pneg %p118
      $region18: #{tpu_custom_call.1} parent=5 // pred_check_branch
        %121 = sbr.rel (%p119) target = $region20
      $region19: #{tpu_custom_call.1} parent=5 // pred_region
        // Predicated region
        $region21: #{tpu_custom_call.1} parent=19 // pred_check
          %p122 = pneg %p37
        $region22: #{tpu_custom_call.1} parent=19 // pred_check_branch
          %124 = sbr.rel (%p122) target = $region24
        $region23: #{tpu_custom_call.1} parent=19 // pred_region
          %s125 = sand.u32 %s27, 1
          %s126 = scalar_lea.sflag [#allocation5], %s125
          %s127 = sand.u32 %s27, 1
          %s128 = smul.addr %s127, 32
          %s129 = scalar_lea.vmem [#allocation4], %s128
          %s130 = smul.u32 2, %s17
          %s132 = ssub.s32 512, 512
          %133 = vsyncadd %s126, %s132
          %s134 = smul.addr %s130, 2
          %s135 = smul.addr %s134, 128
          %s136 = scalar_lea.hbm %s1, %s135
          %s137 = sshll.u32 %s129, 4
          %s138 = int_to_ptr.vmem [resolvable:$true] %s137
          %143 = dma.hbm_to_vmem [thread:$0]  %s136, 512, %s138, %s126, 128, 128, 8
        $region24: #{tpu_custom_call.1} parent=19 // pred_fallthru
          _
      $region20: #{tpu_custom_call.1} parent=5 // pred_fallthru
        _
      %p144 = scmp.le.s32.totalorder 1, %s17
      %p145 = scmp.lt.s32.totalorder %s17, 3
      %p146 = pnand %p144, %p145
      %p147 = pneg %p146
      // Predicated region
      $region25: #{tpu_custom_call.1} parent=5 // pred_check
        _
      $region26: #{tpu_custom_call.1} parent=5 // pred_check_branch
        %149 = sbr.rel (%p146) target = $region28
      $region27: #{tpu_custom_call.1} parent=5 // pred_region
        %s150 = ssub.s32 %s17, 1
        %s151 = sand.u32 %s30, 1
        %s152 = scalar_lea.sflag [#allocation5], %s151
        %s153 = sand.u32 %s30, 1
        %s154 = smul.addr %s153, 32
        %s155 = scalar_lea.vmem [#allocation4], %s154
        // Predicated region
        $region29: #{tpu_custom_call.1} parent=27 // pred_check
          %p156 = pneg %p43
        $region30: #{tpu_custom_call.1} parent=27 // pred_check_branch
          %158 = sbr.rel (%p156) target = $region32
        $region31: #{tpu_custom_call.1} parent=27 // pred_region
          %159 = dma.done %s152, 512
        $region32: #{tpu_custom_call.1} parent=27 // pred_fallthru
          _
        // Predicated region
        $region33: #{tpu_custom_call.1} parent=27 // pred_check
          %p160 = pneg %p64
        $region34: #{tpu_custom_call.1} parent=27 // pred_check_branch
          %162 = sbr.rel (%p160) target = $region36
        $region35: #{tpu_custom_call.1} parent=27 // pred_region
          %163 = dma.done [#allocation8], 3072
        $region36: #{tpu_custom_call.1} parent=27 // pred_fallthru
          _
        %s164 = sand.u32 %s30, 1
        %s165 = scalar_lea.sflag [#allocation5], %s164
        %s166 = sand.u32 %s30, 1
        %s167 = smul.addr %s166, 32
        %s168 = scalar_lea.vmem [#allocation4], %s167
        %p169 = pneg %p43
        %p170 = pneg %p40
        %p171 = pneg %p64
        %p172 = pneg %p61
        %p173 = pneg %p90
        %p174 = pneg %p87
        %s175 = sand.u32 %s77, 1
        %s176 = scalar_lea.sflag [#allocation6], %s175
        %s177 = sand.u32 %s77, 1
        %s178 = smul.addr %s177, 32
        %s179 = scalar_lea.vmem [#allocation9], %s178
        %s180 = smul.u32 2, %s22
        %s181 = smul.u32 2, %s22
        %v182 = vld [vmem:[%s155] sm:$0xff]
        %v183 = vld [vmem:[%s155 + $0x8] sm:$0xff]
        %v184 = vld [vmem:[%s155 + $0x10] sm:$0xff]
        %v185 = vld [vmem:[%s155 + $0x18] sm:$0xff]
        %v186 = vld [vmem:[#allocation7] sm:$0xff]
        %v187 = vld [vmem:[#allocation7 + $0x8] sm:$0xff]
        %v188 = vld [vmem:[#allocation7 + $0x10] sm:$0xff]
        %v189 = vld [vmem:[#allocation7 + $0x18] sm:$0xff]
        %v190 = vld [vmem:[#allocation7 + $0x20] sm:$0xff]
        %v191 = vld [vmem:[#allocation7 + $0x28] sm:$0xff]
        %v192 = vld [vmem:[#allocation7 + $0x30] sm:$0xff]
        %v193 = vld [vmem:[#allocation7 + $0x38] sm:$0xff]
        %v194 = vld [vmem:[#allocation7 + $0x40] sm:$0xff]
        %v195 = vld [vmem:[#allocation7 + $0x48] sm:$0xff]
        %v196 = vld [vmem:[#allocation7 + $0x50] sm:$0xff]
        %v197 = vld [vmem:[#allocation7 + $0x58] sm:$0xff]
        %v198 = vld [vmem:[#allocation7 + $0x60] sm:$0xff]
        %v199 = vld [vmem:[#allocation7 + $0x68] sm:$0xff]
        %v200 = vld [vmem:[#allocation7 + $0x70] sm:$0xff]
        %v201 = vld [vmem:[#allocation7 + $0x78] sm:$0xff]
        %v202 = vld [vmem:[#allocation7 + $0x80] sm:$0xff]
        %v203 = vld [vmem:[#allocation7 + $0x88] sm:$0xff]
        %v204 = vld [vmem:[#allocation7 + $0x90] sm:$0xff]
        %v205 = vld [vmem:[#allocation7 + $0x98] sm:$0xff]
        %v206 = vld [vmem:[#allocation7 + $0xa0] sm:$0xff]
        %v207 = vld [vmem:[#allocation7 + $0xa8] sm:$0xff]
        %v208 = vld [vmem:[#allocation7 + $0xb0] sm:$0xff]
        %v209 = vld [vmem:[#allocation7 + $0xb8] sm:$0xff]
        %vm210 = vcmask 523264
        %v212 = vsel %vm210, %v182, 0
        %v215 = vsel %vm210, %v183, 0
        %v218 = vsel %vm210, %v184, 0
        %v221 = vsel %vm210, %v185, 0
        %223 = vmatprep.subr.mxu0 0.0
        %224 = vmatpush1.msra.mxu0 0.0
        %225 = vmatprep.subr.mxu0 0.0
        %226 = vmatpush1.msra.mxu0 0.0
        %227 = vmatprep.subr.mxu0 0.0
        %228 = vmatpush1.msra.mxu0 0.0
        %229 = vmatprep.subr.mxu0 0.0
        %230 = vmatpush1.msra.mxu0 0.0
        %231 = vmatprep.subr.mxu0 0.0
        %232 = vmatpush1.msra.mxu0 0.0
        %233 = vmatprep.subr.mxu0 0.0
        %234 = vmatpush1.msra.mxu0 0.0
        %235 = vmatprep.subr.mxu0 0.0
        %236 = vmatpush1.msra.mxu0 0.0
        %237 = vmatprep.subr.mxu0 0.0
        %238 = vmatpush1.msra.mxu0 0.0
        %239 = vmatprep.subr.mxu0 %v208
        %240 = vmatpush1.msra.mxu0 %v207
        %241 = vmatprep.subr.mxu0 %v205
        %242 = vmatpush1.msra.mxu0 %v204
        %243 = vmatprep.subr.mxu0 %v202
        %244 = vmatpush1.msra.mxu0 %v201
        %245 = vmatprep.subr.mxu0 %v199
        %246 = vmatpush1.msra.mxu0 %v198
        %247 = vmatprep.subr.mxu0 %v196
        %248 = vmatpush1.msra.mxu0 %v195
        %249 = vmatprep.subr.mxu0 %v193
        %250 = vmatpush1.msra.mxu0 %v192
        %251 = vmatprep.subr.mxu0 %v190
        %252 = vmatpush1.msra.mxu0 %v189
        %253 = vmatprep.subr.mxu0 %v187
        %254 = vmatpush1.msra.mxu0 %v186
        %255 = vmatprep.subr.mxu0 0.0
        %256 = vmatpush2.msra.mxu0 0.0
        %257 = vmatprep.subr.mxu0 0.0
        %258 = vmatpush2.msra.mxu0 0.0
        %259 = vmatprep.subr.mxu0 0.0
        %260 = vmatpush2.msra.mxu0 0.0
        %261 = vmatprep.subr.mxu0 0.0
        %262 = vmatpush2.msra.mxu0 0.0
        %263 = vmatprep.subr.mxu0 0.0
        %264 = vmatpush2.msra.mxu0 0.0
        %265 = vmatprep.subr.mxu0 0.0
        %266 = vmatpush2.msra.mxu0 0.0
        %267 = vmatprep.subr.mxu0 0.0
        %268 = vmatpush2.msra.mxu0 0.0
        %269 = vmatprep.subr.mxu0 0.0
        %270 = vmatpush2.msra.mxu0 0.0
        %271 = vmatprep.subr.mxu0 0.0
        %272 = vmatpush2.msra.mxu0 0.0
        %273 = vmatprep.subr.mxu0 0.0
        %274 = vmatpush2.msra.mxu0 0.0
        %275 = vmatprep.subr.mxu0 0.0
        %276 = vmatpush2.msra.mxu0 0.0
        %277 = vmatprep.subr.mxu0 0.0
        %278 = vmatpush2.msra.mxu0 0.0
        %279 = vmatprep.subr.mxu0 0.0
        %280 = vmatpush2.msra.mxu0 0.0
        %281 = vmatprep.subr.mxu0 0.0
        %282 = vmatpush2.msra.mxu0 0.0
        %283 = vmatprep.subr.mxu0 0.0
        %284 = vmatpush2.msra.mxu0 0.0
        %285 = vmatprep.subr.mxu0 0.0
        %286 = vmatpush2.msra.mxu0 0.0
        %287 = vmatprep.mubr.f32.mxu0 0.0
        %288 = vmatmul.mubr.f32.gmra.mxu0 %v212
        %v289 = vpop.f32.mrf.mxu0
        %v290 = vadd.f32 0.0, %v289
        %v291 = vpop.f32.mrf.mxu0
        %v292 = vadd.f32 0.0, %v291
        %293 = vmatprep.mubr.f32.mxu0 0.0
        %294 = vmatmul.mubr.f32.gmra.mxu0 %v215
        %v295 = vpop.f32.mrf.mxu0
        %v296 = vadd.f32 0.0, %v295
        %v297 = vpop.f32.mrf.mxu0
        %v298 = vadd.f32 0.0, %v297
        %299 = vmatprep.mubr.f32.mxu0 0.0
        %300 = vmatmul.mubr.f32.gmra.mxu0 %v218
        %v301 = vpop.f32.mrf.mxu0
        %v302 = vadd.f32 0.0, %v301
        %v303 = vpop.f32.mrf.mxu0
        %v304 = vadd.f32 0.0, %v303
        %305 = vmatprep.mubr.f32.mxu0 0.0
        %306 = vmatmul.mubr.f32.gmra.mxu0 %v221
        %v307 = vpop.f32.mrf.mxu0
        %v308 = vadd.f32 0.0, %v307
        %v309 = vpop.f32.mrf.mxu0
        %v310 = vadd.f32 0.0, %v309
        %311 = vdwg.mxu0
        %312 = vmatprep.subr.mxu0 0.0
        %313 = vmatpush1.msra.mxu0 0.0
        %314 = vmatprep.subr.mxu0 0.0
        %315 = vmatpush1.msra.mxu0 0.0
        %316 = vmatprep.subr.mxu0 0.0
        %317 = vmatpush1.msra.mxu0 0.0
        %318 = vmatprep.subr.mxu0 0.0
        %319 = vmatpush1.msra.mxu0 0.0
        %320 = vmatprep.subr.mxu0 0.0
        %321 = vmatpush1.msra.mxu0 0.0
        %322 = vmatprep.subr.mxu0 0.0
        %323 = vmatpush1.msra.mxu0 0.0
        %324 = vmatprep.subr.mxu0 0.0
        %325 = vmatpush1.msra.mxu0 0.0
        %326 = vmatprep.subr.mxu0 0.0
        %327 = vmatpush1.msra.mxu0 0.0
        %328 = vmatprep.subr.mxu0 0.0
        %329 = vmatpush1.msra.mxu0 %v209
        %330 = vmatprep.subr.mxu0 0.0
        %331 = vmatpush1.msra.mxu0 %v206
        %332 = vmatprep.subr.mxu0 0.0
        %333 = vmatpush1.msra.mxu0 %v203
        %334 = vmatprep.subr.mxu0 0.0
        %335 = vmatpush1.msra.mxu0 %v200
        %336 = vmatprep.subr.mxu0 0.0
        %337 = vmatpush1.msra.mxu0 %v197
        %338 = vmatprep.subr.mxu0 0.0
        %339 = vmatpush1.msra.mxu0 %v194
        %340 = vmatprep.subr.mxu0 0.0
        %341 = vmatpush1.msra.mxu0 %v191
        %342 = vmatprep.subr.mxu0 0.0
        %343 = vmatpush1.msra.mxu0 %v188
        %344 = vmatprep.subr.mxu0 0.0
        %345 = vmatpush2.msra.mxu0 0.0
        %346 = vmatprep.subr.mxu0 0.0
        %347 = vmatpush2.msra.mxu0 0.0
        %348 = vmatprep.subr.mxu0 0.0
        %349 = vmatpush2.msra.mxu0 0.0
        %350 = vmatprep.subr.mxu0 0.0
        %351 = vmatpush2.msra.mxu0 0.0
        %352 = vmatprep.subr.mxu0 0.0
        %353 = vmatpush2.msra.mxu0 0.0
        %354 = vmatprep.subr.mxu0 0.0
        %355 = vmatpush2.msra.mxu0 0.0
        %356 = vmatprep.subr.mxu0 0.0
        %357 = vmatpush2.msra.mxu0 0.0
        %358 = vmatprep.subr.mxu0 0.0
        %359 = vmatpush2.msra.mxu0 0.0
        %360 = vmatprep.subr.mxu0 0.0
        %361 = vmatpush2.msra.mxu0 0.0
        %362 = vmatprep.subr.mxu0 0.0
        %363 = vmatpush2.msra.mxu0 0.0
        %364 = vmatprep.subr.mxu0 0.0
        %365 = vmatpush2.msra.mxu0 0.0
        %366 = vmatprep.subr.mxu0 0.0
        %367 = vmatpush2.msra.mxu0 0.0
        %368 = vmatprep.subr.mxu0 0.0
        %369 = vmatpush2.msra.mxu0 0.0
        %370 = vmatprep.subr.mxu0 0.0
        %371 = vmatpush2.msra.mxu0 0.0
        %372 = vmatprep.subr.mxu0 0.0
        %373 = vmatpush2.msra.mxu0 0.0
        %374 = vmatprep.subr.mxu0 0.0
        %375 = vmatpush2.msra.mxu0 0.0
        %376 = vmatprep.mubr.f32.mxu0 0.0
        %377 = vmatmul.mubr.f32.gmra.mxu0 %v212
        %v378 = vpop.f32.mrf.mxu0
        %v379 = vadd.f32 0.0, %v378
        %v380 = vpop.f32.mrf.mxu0
        %381 = vmatprep.mubr.f32.mxu0 0.0
        %382 = vmatmul.mubr.f32.gmra.mxu0 %v215
        %v383 = vpop.f32.mrf.mxu0
        %v384 = vadd.f32 0.0, %v383
        %v385 = vpop.f32.mrf.mxu0
        %386 = vmatprep.mubr.f32.mxu0 0.0
        %387 = vmatmul.mubr.f32.gmra.mxu0 %v218
        %v388 = vpop.f32.mrf.mxu0
        %v389 = vadd.f32 0.0, %v388
        %v390 = vpop.f32.mrf.mxu0
        %391 = vmatprep.mubr.f32.mxu0 0.0
        %392 = vmatmul.mubr.f32.gmra.mxu0 %v221
        %v393 = vpop.f32.mrf.mxu0
        %v394 = vadd.f32 0.0, %v393
        %v395 = vpop.f32.mrf.mxu0
        %396 = vdwg.mxu0
        %v397 = vlaneseq
        %v398 = vshrl.u32 %v397, 7
        %v399 = vadd.s32 %v398, 8
        %v400 = vlaneseq
        %v401 = vand.u32 %v400, 127
        %402 = vmatprep.subr.mxu0 0.0
        %403 = vmatpush1.xpose.msra.mxu0 0.0
        %404 = vmatprep.subr.mxu0 0.0
        %405 = vmatpush1.xpose.msra.mxu0 0.0
        %406 = vmatprep.subr.mxu0 0.0
        %407 = vmatpush1.xpose.msra.mxu0 0.0
        %408 = vmatprep.subr.mxu0 0.0
        %409 = vmatpush1.xpose.msra.mxu0 0.0
        %410 = vmatprep.subr.mxu0 0.0
        %411 = vmatpush1.xpose.msra.mxu0 0.0
        %412 = vmatprep.subr.mxu0 0.0
        %413 = vmatpush1.xpose.msra.mxu0 0.0
        %414 = vmatprep.subr.mxu0 0.0
        %415 = vmatpush1.xpose.msra.mxu0 0.0
        %416 = vmatprep.subr.mxu0 0.0
        %417 = vmatpush1.xpose.msra.mxu0 0.0
        %418 = vmatprep.subr.mxu0 0.0
        %419 = vmatpush1.xpose.msra.mxu0 0.0
        %420 = vmatprep.subr.mxu0 0.0
        %421 = vmatpush1.xpose.msra.mxu0 0.0
        %422 = vmatprep.subr.mxu0 0.0
        %423 = vmatpush1.xpose.msra.mxu0 0.0
        %424 = vmatprep.subr.mxu0 0.0
        %425 = vmatpush1.xpose.msra.mxu0 0.0
        %426 = vmatprep.subr.mxu0 0.0
        %427 = vmatpush1.xpose.msra.mxu0 0.0
        %428 = vmatprep.subr.mxu0 0.0
        %429 = vmatpush1.xpose.msra.mxu0 0.0
        %430 = vmatprep.subr.mxu0 0.0
        %431 = vmatpush1.xpose.msra.mxu0 %v298
        %432 = vmatprep.subr.mxu0 0.0
        %433 = vmatpush1.xpose.msra.mxu0 %v292
        %434 = vmatprep.subr.mxu0 0.0
        %435 = vmatpush2.xpose.msra.mxu0 0.0
        %436 = vmatprep.subr.mxu0 0.0
        %437 = vmatpush2.xpose.msra.mxu0 0.0
        %438 = vmatprep.subr.mxu0 0.0
        %439 = vmatpush2.xpose.msra.mxu0 0.0
        %440 = vmatprep.subr.mxu0 0.0
        %441 = vmatpush2.xpose.msra.mxu0 0.0
        %442 = vmatprep.subr.mxu0 0.0
        %443 = vmatpush2.xpose.msra.mxu0 0.0
        %444 = vmatprep.subr.mxu0 0.0
        %445 = vmatpush2.xpose.msra.mxu0 0.0
        %446 = vmatprep.subr.mxu0 0.0
        %447 = vmatpush2.xpose.msra.mxu0 0.0
        %448 = vmatprep.subr.mxu0 0.0
        %449 = vmatpush2.xpose.msra.mxu0 0.0
        %450 = vmatprep.subr.mxu0 0.0
        %451 = vmatpush2.xpose.msra.mxu0 0.0
        %452 = vmatprep.subr.mxu0 0.0
        %453 = vmatpush2.xpose.msra.mxu0 0.0
        %454 = vmatprep.subr.mxu0 0.0
        %455 = vmatpush2.xpose.msra.mxu0 0.0
        %456 = vmatprep.subr.mxu0 0.0
        %457 = vmatpush2.xpose.msra.mxu0 0.0
        %458 = vmatprep.subr.mxu0 0.0
        %459 = vmatpush2.xpose.msra.mxu0 0.0
        %460 = vmatprep.subr.mxu0 0.0
        %461 = vmatpush2.xpose.msra.mxu0 0.0
        %462 = vmatprep.subr.mxu0 0.0
        %463 = vmatpush2.xpose.msra.mxu0 0.0
        %464 = vmatprep.subr.mxu0 0.0
        %465 = vmatpush2.xpose.msra.mxu0 0.0
        %466 = vmatprep.mubr.f32.mxu0 0.0
        %467 = vmatmul.mubr.f32.gmra.mxu0 %v290
        %v468 = vpop.f32.mrf.mxu0
        %v469 = vadd.f32 0.0, %v468
        %v470 = vpop.f32.mrf.mxu0
        %471 = vmatprep.mubr.f32.mxu0 0.0
        %472 = vmatmul.mubr.f32.gmra.mxu0 %v296
        %v473 = vpop.f32.mrf.mxu0
        %v474 = vadd.f32 0.0, %v473
        %v475 = vpop.f32.mrf.mxu0
        %476 = vdwg.mxu0
        %477 = vmatprep.subr.mxu0 0.0
        %478 = vmatpush1.xpose.msra.mxu0 0.0
        %479 = vmatprep.subr.mxu0 0.0
        %480 = vmatpush1.xpose.msra.mxu0 0.0
        %481 = vmatprep.subr.mxu0 0.0
        %482 = vmatpush1.xpose.msra.mxu0 0.0
        %483 = vmatprep.subr.mxu0 0.0
        %484 = vmatpush1.xpose.msra.mxu0 0.0
        %485 = vmatprep.subr.mxu0 0.0
        %486 = vmatpush1.xpose.msra.mxu0 0.0
        %487 = vmatprep.subr.mxu0 0.0
        %488 = vmatpush1.xpose.msra.mxu0 0.0
        %489 = vmatprep.subr.mxu0 0.0
        %490 = vmatpush1.xpose.msra.mxu0 0.0
        %491 = vmatprep.subr.mxu0 0.0
        %492 = vmatpush1.xpose.msra.mxu0 0.0
        %493 = vmatprep.subr.mxu0 0.0
        %494 = vmatpush1.xpose.msra.mxu0 0.0
        %495 = vmatprep.subr.mxu0 0.0
        %496 = vmatpush1.xpose.msra.mxu0 0.0
        %497 = vmatprep.subr.mxu0 0.0
        %498 = vmatpush1.xpose.msra.mxu0 0.0
        %499 = vmatprep.subr.mxu0 0.0
        %500 = vmatpush1.xpose.msra.mxu0 0.0
        %501 = vmatprep.subr.mxu0 0.0
        %502 = vmatpush1.xpose.msra.mxu0 0.0
        %503 = vmatprep.subr.mxu0 0.0
        %504 = vmatpush1.xpose.msra.mxu0 0.0
        %505 = vmatprep.subr.mxu0 0.0
        %506 = vmatpush1.xpose.msra.mxu0 %v310
        %507 = vmatprep.subr.mxu0 0.0
        %508 = vmatpush1.xpose.msra.mxu0 %v304
        %509 = vmatprep.subr.mxu0 0.0
        %510 = vmatpush2.xpose.msra.mxu0 0.0
        %511 = vmatprep.subr.mxu0 0.0
        %512 = vmatpush2.xpose.msra.mxu0 0.0
        %513 = vmatprep.subr.mxu0 0.0
        %514 = vmatpush2.xpose.msra.mxu0 0.0
        %515 = vmatprep.subr.mxu0 0.0
        %516 = vmatpush2.xpose.msra.mxu0 0.0
        %517 = vmatprep.subr.mxu0 0.0
        %518 = vmatpush2.xpose.msra.mxu0 0.0
        %519 = vmatprep.subr.mxu0 0.0
        %520 = vmatpush2.xpose.msra.mxu0 0.0
        %521 = vmatprep.subr.mxu0 0.0
        %522 = vmatpush2.xpose.msra.mxu0 0.0
        %523 = vmatprep.subr.mxu0 0.0
        %524 = vmatpush2.xpose.msra.mxu0 0.0
        %525 = vmatprep.subr.mxu0 0.0
        %526 = vmatpush2.xpose.msra.mxu0 0.0
        %527 = vmatprep.subr.mxu0 0.0
        %528 = vmatpush2.xpose.msra.mxu0 0.0
        %529 = vmatprep.subr.mxu0 0.0
        %530 = vmatpush2.xpose.msra.mxu0 0.0
        %531 = vmatprep.subr.mxu0 0.0
        %532 = vmatpush2.xpose.msra.mxu0 0.0
        %533 = vmatprep.subr.mxu0 0.0
        %534 = vmatpush2.xpose.msra.mxu0 0.0
        %535 = vmatprep.subr.mxu0 0.0
        %536 = vmatpush2.xpose.msra.mxu0 0.0
        %537 = vmatprep.subr.mxu0 0.0
        %538 = vmatpush2.xpose.msra.mxu0 0.0
        %539 = vmatprep.subr.mxu0 0.0
        %540 = vmatpush2.xpose.msra.mxu0 0.0
        %541 = vmatprep.mubr.f32.mxu0 0.0
        %542 = vmatmul.mubr.f32.gmra.mxu0 %v302
        %v543 = vpop.f32.mrf.mxu0
        %v544 = vadd.f32 0.0, %v543
        %v545 = vpop.f32.mrf.mxu0
        %546 = vmatprep.mubr.f32.mxu0 0.0
        %547 = vmatmul.mubr.f32.gmra.mxu0 %v308
        %v548 = vpop.f32.mrf.mxu0
        %v549 = vadd.f32 0.0, %v548
        %v550 = vpop.f32.mrf.mxu0
        %551 = vdwg.mxu0
        %vm552 = vcmp.le.s32.totalorder %v401, %v398
        %vm553 = vcmp.le.s32.totalorder %v401, %v399
        %v554 = vsel %vm552, 1, 0
        %v555 = vsel %vm553, 1, 0
        %vm556 = vcmp.eq.s32.totalorder %v554, 1
        %vm557 = vcmp.eq.s32.totalorder %v555, 1
        %v558 = vsel %vm556, %v469, -1e+30
        %v559 = vsel %vm557, %v474, -1e+30
        %v560 = vsel %vm556, %v544, -1e+30
        %v561 = vsel %vm557, %v549, -1e+30
        %vm562 = vcmask 130048
        %v563 = vsel %vm562, %v558, -inf
        %564 = vmax.xlane.f32.xlu0 %v563
        %v565 = vpop.xlane.xlu0 %564
        %v566 = vsel %vm562, %v559, -inf
        %567 = vmax.xlane.f32.xlu0 %v566
        %v568 = vpop.xlane.xlu0 %567
        %v569 = vsel %vm562, %v560, -inf
        %570 = vmax.xlane.f32.xlu0 %v569
        %v571 = vpop.xlane.xlu0 %570
        %v572 = vsel %vm562, %v561, -inf
        %573 = vmax.xlane.f32.xlu0 %v572
        %v574 = vpop.xlane.xlu0 %573
        %v575 = vmax.f32 %v565, -1e+30
        %v576 = vmax.f32 %v568, -1e+30
        %v577 = vmax.f32 %v571, -1e+30
        %v578 = vmax.f32 %v574, -1e+30
        %v579 = vsub.f32 -1e+30, %v575
        %v580 = vsub.f32 -1e+30, %v576
        %v581 = vsub.f32 -1e+30, %v577
        %v582 = vsub.f32 -1e+30, %v578
        %v583 = vmul.f32 %v579, 1.442695
        %v584 = vpow.pop %v583
        %v585 = vmul.f32 %v580, 1.442695
        %v586 = vpow.pop %v585
        %v587 = vmul.f32 %v581, 1.442695
        %v588 = vpow.pop %v587
        %v589 = vmul.f32 %v582, 1.442695
        %v590 = vpow.pop %v589
        %v591 = vsub.f32 %v558, %v575
        %v592 = vsub.f32 %v559, %v576
        %v593 = vsub.f32 %v560, %v577
        %v594 = vsub.f32 %v561, %v578
        %v595 = vmul.f32 %v591, 1.442695
        %v596 = vpow.pop %v595
        %v597 = vmul.f32 %v592, 1.442695
        %v598 = vpow.pop %v597
        %v599 = vmul.f32 %v593, 1.442695
        %v600 = vpow.pop %v599
        %v601 = vmul.f32 %v594, 1.442695
        %v602 = vpow.pop %v601
        %v603 = vmul.f32 %v584, 0.0
        %v604 = vmul.f32 %v586, 0.0
        %v605 = vmul.f32 %v588, 0.0
        %v606 = vmul.f32 %v590, 0.0
        %v607 = vsel %vm562, %v596, 0.0
        %608 = vadd.xlane.f32.xlu0 %v607
        %v609 = vpop.xlane.xlu0 %608
        %v610 = vsel %vm562, %v598, 0.0
        %611 = vadd.xlane.f32.xlu0 %v610
        %v612 = vpop.xlane.xlu0 %611
        %v613 = vsel %vm562, %v600, 0.0
        %614 = vadd.xlane.f32.xlu0 %v613
        %v615 = vpop.xlane.xlu0 %614
        %v616 = vsel %vm562, %v602, 0.0
        %617 = vadd.xlane.f32.xlu0 %v616
        %v618 = vpop.xlane.xlu0 %617
        %v619 = vadd.f32 %v603, %v609
        %v620 = vadd.f32 %v604, %v612
        %v621 = vadd.f32 %v605, %v615
        %v622 = vadd.f32 %v606, %v618
        %v624 = vsel %vm562, %v596, 0
        %v627 = vsel %vm562, %v598, 0
        %629 = vmatprep.subr.mxu0 0.0
        %630 = vmatpush1.msra.mxu0 0.0
        %631 = vmatprep.subr.mxu0 0.0
        %632 = vmatpush1.msra.mxu0 0.0
        %633 = vmatprep.subr.mxu0 0.0
        %634 = vmatpush1.msra.mxu0 0.0
        %635 = vmatprep.subr.mxu0 0.0
        %636 = vmatpush1.msra.mxu0 0.0
        %637 = vmatprep.subr.mxu0 0.0
        %638 = vmatpush1.msra.mxu0 0.0
        %639 = vmatprep.subr.mxu0 0.0
        %640 = vmatpush1.msra.mxu0 0.0
        %641 = vmatprep.subr.mxu0 0.0
        %642 = vmatpush1.msra.mxu0 0.0
        %643 = vmatprep.subr.mxu0 0.0
        %644 = vmatpush1.msra.mxu0 0.0
        %645 = vmatprep.subr.mxu0 0.0
        %646 = vmatpush1.msra.mxu0 0.0
        %647 = vmatprep.subr.mxu0 0.0
        %648 = vmatpush1.msra.mxu0 0.0
        %649 = vmatprep.subr.mxu0 0.0
        %650 = vmatpush1.msra.mxu0 0.0
        %651 = vmatprep.subr.mxu0 0.0
        %652 = vmatpush1.msra.mxu0 0.0
        %653 = vmatprep.subr.mxu0 0.0
        %654 = vmatpush1.msra.mxu0 0.0
        %655 = vmatprep.subr.mxu0 0.0
        %656 = vmatpush1.msra.mxu0 0.0
        %657 = vmatprep.subr.mxu0 0.0
        %658 = vmatpush1.msra.mxu0 %v384
        %659 = vmatprep.subr.mxu0 0.0
        %660 = vmatpush1.msra.mxu0 %v379
        %661 = vmatprep.subr.mxu0 0.0
        %662 = vmatpush2.msra.mxu0 0.0
        %663 = vmatprep.subr.mxu0 0.0
        %664 = vmatpush2.msra.mxu0 0.0
        %665 = vmatprep.subr.mxu0 0.0
        %666 = vmatpush2.msra.mxu0 0.0
        %667 = vmatprep.subr.mxu0 0.0
        %668 = vmatpush2.msra.mxu0 0.0
        %669 = vmatprep.subr.mxu0 0.0
        %670 = vmatpush2.msra.mxu0 0.0
        %671 = vmatprep.subr.mxu0 0.0
        %672 = vmatpush2.msra.mxu0 0.0
        %673 = vmatprep.subr.mxu0 0.0
        %674 = vmatpush2.msra.mxu0 0.0
        %675 = vmatprep.subr.mxu0 0.0
        %676 = vmatpush2.msra.mxu0 0.0
        %677 = vmatprep.subr.mxu0 0.0
        %678 = vmatpush2.msra.mxu0 0.0
        %679 = vmatprep.subr.mxu0 0.0
        %680 = vmatpush2.msra.mxu0 0.0
        %681 = vmatprep.subr.mxu0 0.0
        %682 = vmatpush2.msra.mxu0 0.0
        %683 = vmatprep.subr.mxu0 0.0
        %684 = vmatpush2.msra.mxu0 0.0
        %685 = vmatprep.subr.mxu0 0.0
        %686 = vmatpush2.msra.mxu0 0.0
        %687 = vmatprep.subr.mxu0 0.0
        %688 = vmatpush2.msra.mxu0 0.0
        %689 = vmatprep.subr.mxu0 0.0
        %690 = vmatpush2.msra.mxu0 0.0
        %691 = vmatprep.subr.mxu0 0.0
        %692 = vmatpush2.msra.mxu0 0.0
        %693 = vmatprep.mubr.f32.mxu0 0.0
        %694 = vmatmul.mubr.f32.gmra.mxu0 %v624
        %v695 = vpop.f32.mrf.mxu0
        %v696 = vadd.f32 0.0, %v695
        %v697 = vpop.f32.mrf.mxu0
        %698 = vmatprep.mubr.f32.mxu0 0.0
        %699 = vmatmul.mubr.f32.gmra.mxu0 %v627
        %v700 = vpop.f32.mrf.mxu0
        %v701 = vadd.f32 0.0, %v700
        %v702 = vpop.f32.mrf.mxu0
        %703 = vdwg.mxu0
        %v705 = vsel %vm562, %v600, 0
        %v708 = vsel %vm562, %v602, 0
        %710 = vmatprep.subr.mxu0 0.0
        %711 = vmatpush1.msra.mxu0 0.0
        %712 = vmatprep.subr.mxu0 0.0
        %713 = vmatpush1.msra.mxu0 0.0
        %714 = vmatprep.subr.mxu0 0.0
        %715 = vmatpush1.msra.mxu0 0.0
        %716 = vmatprep.subr.mxu0 0.0
        %717 = vmatpush1.msra.mxu0 0.0
        %718 = vmatprep.subr.mxu0 0.0
        %719 = vmatpush1.msra.mxu0 0.0
        %720 = vmatprep.subr.mxu0 0.0
        %721 = vmatpush1.msra.mxu0 0.0
        %722 = vmatprep.subr.mxu0 0.0
        %723 = vmatpush1.msra.mxu0 0.0
        %724 = vmatprep.subr.mxu0 0.0
        %725 = vmatpush1.msra.mxu0 0.0
        %726 = vmatprep.subr.mxu0 0.0
        %727 = vmatpush1.msra.mxu0 0.0
        %728 = vmatprep.subr.mxu0 0.0
        %729 = vmatpush1.msra.mxu0 0.0
        %730 = vmatprep.subr.mxu0 0.0
        %731 = vmatpush1.msra.mxu0 0.0
        %732 = vmatprep.subr.mxu0 0.0
        %733 = vmatpush1.msra.mxu0 0.0
        %734 = vmatprep.subr.mxu0 0.0
        %735 = vmatpush1.msra.mxu0 0.0
        %736 = vmatprep.subr.mxu0 0.0
        %737 = vmatpush1.msra.mxu0 0.0
        %738 = vmatprep.subr.mxu0 0.0
        %739 = vmatpush1.msra.mxu0 %v394
        %740 = vmatprep.subr.mxu0 0.0
        %741 = vmatpush1.msra.mxu0 %v389
        %742 = vmatprep.subr.mxu0 0.0
        %743 = vmatpush2.msra.mxu0 0.0
        %744 = vmatprep.subr.mxu0 0.0
        %745 = vmatpush2.msra.mxu0 0.0
        %746 = vmatprep.subr.mxu0 0.0
        %747 = vmatpush2.msra.mxu0 0.0
        %748 = vmatprep.subr.mxu0 0.0
        %749 = vmatpush2.msra.mxu0 0.0
        %750 = vmatprep.subr.mxu0 0.0
        %751 = vmatpush2.msra.mxu0 0.0
        %752 = vmatprep.subr.mxu0 0.0
        %753 = vmatpush2.msra.mxu0 0.0
        %754 = vmatprep.subr.mxu0 0.0
        %755 = vmatpush2.msra.mxu0 0.0
        %756 = vmatprep.subr.mxu0 0.0
        %757 = vmatpush2.msra.mxu0 0.0
        %758 = vmatprep.subr.mxu0 0.0
        %759 = vmatpush2.msra.mxu0 0.0
        %760 = vmatprep.subr.mxu0 0.0
        %761 = vmatpush2.msra.mxu0 0.0
        %762 = vmatprep.subr.mxu0 0.0
        %763 = vmatpush2.msra.mxu0 0.0
        %764 = vmatprep.subr.mxu0 0.0
        %765 = vmatpush2.msra.mxu0 0.0
        %766 = vmatprep.subr.mxu0 0.0
        %767 = vmatpush2.msra.mxu0 0.0
        %768 = vmatprep.subr.mxu0 0.0
        %769 = vmatpush2.msra.mxu0 0.0
        %770 = vmatprep.subr.mxu0 0.0
        %771 = vmatpush2.msra.mxu0 0.0
        %772 = vmatprep.subr.mxu0 0.0
        %773 = vmatpush2.msra.mxu0 0.0
        %774 = vmatprep.mubr.f32.mxu0 0.0
        %775 = vmatmul.mubr.f32.gmra.mxu0 %v705
        %v776 = vpop.f32.mrf.mxu0
        %v777 = vadd.f32 0.0, %v776
        %v778 = vpop.f32.mrf.mxu0
        %779 = vmatprep.mubr.f32.mxu0 0.0
        %780 = vmatmul.mubr.f32.gmra.mxu0 %v708
        %v781 = vpop.f32.mrf.mxu0
        %v782 = vadd.f32 0.0, %v781
        %v783 = vpop.f32.mrf.mxu0
        %784 = vdwg.mxu0
        %v785 = vadd.f32 %v603, %v696
        %v786 = vadd.f32 %v604, %v701
        %v787 = vadd.f32 %v605, %v777
        %v788 = vadd.f32 %v606, %v782
        %v789 = vrcp.pop %v619
        %v790 = vmul.f32 1.0, %v789
        %v791 = vrcp.pop %v620
        %v792 = vmul.f32 1.0, %v791
        %v793 = vrcp.pop %v621
        %v794 = vmul.f32 1.0, %v793
        %v795 = vrcp.pop %v622
        %v796 = vmul.f32 1.0, %v795
        %v797 = vmul.f32 %v785, %v790
        %v798 = vmul.f32 %v786, %v792
        %v799 = vmul.f32 %v787, %v794
        %v800 = vmul.f32 %v788, %v796
        %801 = vst [vmem:[%s179] sm:$0xff] %v797
        %802 = vst [vmem:[%s179 + $0x8] sm:$0xff] %v798
        %803 = vst [vmem:[%s179 + $0x10] sm:$0xff] %v799
        %804 = vst [vmem:[%s179 + $0x18] sm:$0xff] %v800
        %s805 = sand.u32 %s77, 1
        %s806 = scalar_lea.sflag [#allocation6], %s805
        %s807 = sand.u32 %s77, 1
        %s808 = smul.addr %s807, 32
        %s809 = scalar_lea.vmem [#allocation9], %s808
        // Predicated region
        $region37: #{tpu_custom_call.1} parent=27 // pred_check
          %p810 = pneg %p87
        $region38: #{tpu_custom_call.1} parent=27 // pred_check_branch
          %812 = sbr.rel (%p810) target = $region40
        $region39: #{tpu_custom_call.1} parent=27 // pred_region
          %s813 = smul.u32 2, %s22
          %s815 = ssub.s32 512, 512
          %816 = vsyncadd %s806, %s815
          %s817 = smul.addr %s813, 2
          %s818 = smul.addr %s817, 128
          %s819 = scalar_lea.hbm %s3, %s818
          %s820 = sshll.u32 %s809, 4
          %s821 = int_to_ptr.vmem [resolvable:$true] %s820
          %826 = dma.vmem_to_hbm [thread:$0]  %s821, 512, %s819, %s806, 128, 128, 8
        $region40: #{tpu_custom_call.1} parent=27 // pred_fallthru
          _
      $region28: #{tpu_custom_call.1} parent=5 // pred_fallthru
        _
      %p827 = scmp.le.s32.totalorder 2, %s17
      // Predicated region
      $region41: #{tpu_custom_call.1} parent=5 // pred_check
        %p828 = pneg %p827
      $region42: #{tpu_custom_call.1} parent=5 // pred_check_branch
        %830 = sbr.rel (%p828) target = $region44
      $region43: #{tpu_custom_call.1} parent=5 // pred_region
        %s831 = ssub.s32 %s17, 2
        // Predicated region
        $region45: #{tpu_custom_call.1} parent=43 // pred_check
          %p832 = pneg %p93
        $region46: #{tpu_custom_call.1} parent=43 // pred_check_branch
          %834 = sbr.rel (%p832) target = $region48
        $region47: #{tpu_custom_call.1} parent=43 // pred_region
          %s835 = sand.u32 %s78, 1
          %s836 = scalar_lea.sflag [#allocation6], %s835
          %s837 = sand.u32 %s78, 1
          %s838 = smul.addr %s837, 32
          %s839 = scalar_lea.vmem [#allocation9], %s838
          %840 = dma.done %s836, 512
        $region48: #{tpu_custom_call.1} parent=43 // pred_fallthru
          _
      $region44: #{tpu_custom_call.1} parent=5 // pred_fallthru
        _
    $region6: #{tpu_custom_call.1} parent=1 // loop_footer
      %s21 = sadd.s32 1, %s17
    $region7: #{tpu_custom_call.1} parent=1 // loop_footer_branch
      %16 = sbr.rel target = $region3
    $region8: #{tpu_custom_call.1} parent=1 // loop_exit
      _
    %841 = vsyncpa [#allocation5], 1
    %s842 = scalar_lea.sflag [#allocation5], 1
    %843 = vsyncpa %s842, 1
    %844 = vsyncpa [#allocation8], 1
    %845 = vsyncpa [#allocation6], 1
    %s846 = scalar_lea.sflag [#allocation6], 1
    %847 = vsyncpa %s846, 1

</llo_original>
